<compile_context>
chip_gen: v7x
topology: tpu7x:2x2x1
jax: 0.10.0
libtpu: 0.0.40
codegen_flags: <defaults>
</compile_context>

<pallas_src>
import math
import functools

import jax
import jax.numpy as jnp
import numpy as np
from jax.experimental import pallas as pl
from jax.experimental.pallas import tpu as pltpu

# Large finite negative instead of -inf: avoids NaN when a query row has no valid key;
# numerically identical to -inf otherwise (exp underflows to 0).
_NEG = -1e30


# ----------------------------------------------------------------------------
# Small helpers
# ----------------------------------------------------------------------------
def _pick_tile(dim, target, mult):
    """Largest divisor of `dim` that is <= target and a multiple of `mult`;
    falls back to the full dim (a full-dim block is always legal)."""
    if dim <= target:
        return dim
    upper = (target // mult) * mult
    for cand in range(upper, 0, -mult):
        if dim % cand == 0:
            return cand
    return dim


def _sublane_mult(dtype):
    # bf16 native tile is (16, 128); f32 is (8, 128).
    return 16 if jnp.dtype(dtype) == jnp.dtype(jnp.bfloat16) else 8


def _vmem_limit_bytes():
    cap = 128 * 1024 * 1024
    try:
        info = pltpu.get_tpu_info()
        cap = int(getattr(info, "vmem_capacity_bytes", cap))
    except Exception:
        pass
    # leave headroom below physical VMEM (v7x: 64 MiB physical -> ~48 MiB budget)
    return int(min(cap * 3 // 4, 96 * 1024 * 1024))


def _pick_heads_per_group(n_head, head_dim, target_lanes=128):
    """Smallest divisor hk of n_head with hk*head_dim >= 128 lanes (else all heads)."""
    for hk in range(1, n_head + 1):
        if n_head % hk == 0 and hk * head_dim >= target_lanes:
            return hk
    return n_head


def _attention_tq(T, N, B, limit_bytes, itemsize, sub_mult, tq_target):
    """Pick a q-tile size that keeps the attention working set inside the VMEM budget."""
    # fixed: double-buffered (T, N) K and V tiles; per-row: bias + 2x att-out buffers
    # + s/p temporaries (f32, width T) + q/y rows (width N).
    fixed = 4 * T * N * itemsize + (2 << 20)
    per_row = 5 * T * 4 + 4 * N * max(itemsize, 4)
    avail = max(limit_bytes - fixed, per_row * sub_mult)
    tq_cap = max(int(avail // per_row), sub_mult)
    tq = _pick_tile(T, min(tq_target, tq_cap), sub_mult)
    # v7x megacore: keep at least 2 parallel grid steps where possible.
    if B * max(T // tq, 1) < 2 and (T // 2) >= sub_mult:
        tq = _pick_tile(T, T // 2, sub_mult)
    return tq


# ----------------------------------------------------------------------------
# Fused QKV projection:  qkv[g, b, t, :] = x[b, t, :] @ Wqkv[g] + bqkv[g]
#   g enumerates head-groups of q, then k, then v -> output is group-major and
#   lane-dense (last dim = hk*D).  The group axis is innermost so the (tm, C)
#   x tile stays resident in VMEM across all 3G groups (x is read once).
# ----------------------------------------------------------------------------
def _qkv_proj_kernel(x_ref, w_ref, b_ref, o_ref):
    o_ref[...] = (
        jnp.dot(x_ref[...], w_ref[...], preferred_element_type=jnp.float32)
        + b_ref[...]
    ).astype(o_ref.dtype)


def qkv_projection(x, w_qkv, b_qkv, *, tm_target=512):
    """x: (B, T, C); w_qkv: (3G, C, N); b_qkv: (3G, 1, N)  ->  (3G, B, T, N)."""
    B, T, C = x.shape
    G3, _, N = w_qkv.shape
    sub_mult = _sublane_mult(x.dtype)
    itemsize = jnp.dtype(x.dtype).itemsize
    limit = _vmem_limit_bytes()
    # keep the (tm, C) x tile well under the budget (weights + outputs also live there)
    # TODO(synk): for extremely large C the full-C x tile may not fit; a K-tiled
    # reduction-axis fallback would be needed in that regime.
    tm_cap = max((limit // 4) // max(C * itemsize, 1), sub_mult)
    tm = _pick_tile(T, min(tm_target, int(tm_cap)), sub_mult)

    return pl.pallas_call(
        _qkv_proj_kernel,
        out_shape=jax.ShapeDtypeStruct((G3, B, T, N), x.dtype),
        grid_spec=pltpu.PrefetchScalarGridSpec(
            num_scalar_prefetch=0,
            grid=(B, T // tm, G3),
            in_specs=[
                # x block index ignores g -> no re-DMA across the 3G inner steps
                pl.BlockSpec((pl.Squeezed(), tm, C), lambda b, i, g: (b, i, 0)),
                pl.BlockSpec((pl.Squeezed(), C, N), lambda b, i, g: (g, 0, 0)),
                pl.BlockSpec((pl.Squeezed(), 1, N), lambda b, i, g: (g, 0, 0)),
            ],
            out_specs=pl.BlockSpec(
                (pl.Squeezed(), pl.Squeezed(), tm, N), lambda b, i, g: (g, b, i, 0)
            ),
        ),
        compiler_params=pltpu.CompilerParams(
            dimension_semantics=("parallel", "parallel", "arbitrary"),
            vmem_limit_bytes=limit,
        ),
    )(x, w_qkv, b_qkv)


# ----------------------------------------------------------------------------
# Attention: grid (B, Tq-tiles, G); G = n_head / hk is the reduction axis for the
# mean-attention output.  Each step processes hk packed heads:
#   att_h = softmax(q_h k_h^T + mask_bias);  y[:, head cols] = att_h @ v_h
# The mask bias is computed once per (batch, q-tile) at g == 0 into VMEM scratch.
# y is written directly in the PyTorch (B, T, C) head-concatenated layout
# (lane width hk*D), so the output projection is a single dense matmul.
# ----------------------------------------------------------------------------
def _attention_kernel(mask_ref, q_ref, k_ref, v_ref, y_ref, att_ref, bias_ref,
                      *, causal, hk, head_dim, inv_n_head, approx_recip):
    i = pl.program_id(1)
    g = pl.program_id(2)
    tq = q_ref.shape[0]
    T = k_ref.shape[0]

    @pl.when(g == 0)
    def _():
        keep = mask_ref[...] > 0.0                                        # (1, T)
        if causal:
            row = i * tq + jax.lax.broadcasted_iota(jnp.int32, (tq, T), 0)
            col = jax.lax.broadcasted_iota(jnp.int32, (tq, T), 1)
            ok = keep & (row >= col)
        else:
            ok = jnp.broadcast_to(keep, (tq, T))
        bias_ref[...] = jnp.where(ok, 0.0, _NEG)
        att_ref[...] = jnp.zeros_like(att_ref)

    bias = bias_ref[...]
    att_sum = None
    y_parts = []
    for hh in range(hk):                       # static unroll over the packed heads
        lo, hi = hh * head_dim, (hh + 1) * head_dim
        q = q_ref[:, lo:hi]
        k = k_ref[:, lo:hi]
        v = v_ref[:, lo:hi]
        # q @ k^T contracting over D; 1/sqrt(D) is folded into the q weights host-side.
        s = jax.lax.dot_general(q, k, (((1,), (1,)), ((), ())),
                                preferred_element_type=jnp.float32)
        s = s + bias
        s = s - jnp.max(s, axis=-1, keepdims=True)
        p = jnp.exp(s)
        inv = pl.reciprocal(jnp.sum(p, axis=-1, keepdims=True), approx=approx_recip)
        y_h = jax.lax.dot_general(p.astype(v.dtype), v, (((1,), (0,)), ((), ())),
                                  preferred_element_type=jnp.float32) * inv
        y_parts.append(y_h)
        att_h = p * inv
        att_sum = att_h if att_sum is None else att_sum + att_h

    y = y_parts[0] if hk == 1 else jnp.concatenate(y_parts, axis=-1)
    y_ref[...] = y.astype(y_ref.dtype)

    # Mean over heads: accumulate per-group sums across g, scale once at the end.
    att_ref[...] = att_ref[...] + att_sum

    @pl.when(g == pl.num_programs(2) - 1)
    def _():
        att_ref[...] = att_ref[...] * inv_n_head


def attention(qkv, mask_f, *, n_head, heads_per_group, causal, tq_target=256):
    """qkv: (3G, B, T, hk*D); mask_f: (B, T) float -> y:(B,T,C), att_mean:(B,T,T)."""
    G3, B, T, N = qkv.shape
    hk = heads_per_group
    G = G3 // 3
    D = N // hk
    C = n_head * D
    sub_mult = _sublane_mult(qkv.dtype)
    itemsize = jnp.dtype(qkv.dtype).itemsize
    limit = _vmem_limit_bytes()
    tq = _attention_tq(T, N, B, limit, itemsize, sub_mult, tq_target)

    kernel = functools.partial(
        _attention_kernel,
        causal=causal, hk=hk, head_dim=D, inv_n_head=1.0 / n_head,
        # approx reciprocal only on the bf16 path (keeps the f32 1e-5 check exact)
        approx_recip=(jnp.dtype(qkv.dtype) != jnp.dtype(jnp.float32)),
    )

    y, att = pl.pallas_call(
        kernel,
        out_shape=(
            jax.ShapeDtypeStruct((B, T, C), qkv.dtype),
            jax.ShapeDtypeStruct((B, T, T), jnp.float32),
        ),
        grid_spec=pltpu.PrefetchScalarGridSpec(
            num_scalar_prefetch=0,
            grid=(B, T // tq, G),
            in_specs=[
                pl.BlockSpec((1, T), lambda b, i, g: (b, 0)),              # padding mask
                pl.BlockSpec((pl.Squeezed(), pl.Squeezed(), tq, N),
                             lambda b, i, g: (g, b, i, 0)),                # q group
                pl.BlockSpec((pl.Squeezed(), pl.Squeezed(), T, N),
                             lambda b, i, g: (G + g, b, 0, 0)),            # k group (full T)
                pl.BlockSpec((pl.Squeezed(), pl.Squeezed(), T, N),
                             lambda b, i, g: (2 * G + g, b, 0, 0)),        # v group (full T)
            ],
            out_specs=(
                pl.BlockSpec((pl.Squeezed(), tq, N),
                             lambda b, i, g: (b, i, g)),                   # y (B,T,C) lane-dense
                pl.BlockSpec((pl.Squeezed(), tq, T),
                             lambda b, i, g: (b, i, 0)),                   # mean attention
            ),
            scratch_shapes=[pltpu.VMEM((tq, T), jnp.float32)],             # cached mask bias
        ),
        compiler_params=pltpu.CompilerParams(
            dimension_semantics=("parallel", "parallel", "arbitrary"),
            vmem_limit_bytes=limit,
        ),
    )(mask_f, qkv, qkv, qkv)
    return y, att


# ----------------------------------------------------------------------------
# Output projection: one dense tiled matmul  out = y @ Wp^T + bp
#   y is already (B, T, C) head-concatenated, so the contraction depth per step
#   is tk (>=128), not the per-head D.
# ----------------------------------------------------------------------------
def _out_proj_kernel(y_ref, w_ref, b_ref, o_ref, acc_ref):
    kk = pl.program_id(3)

    @pl.when(kk == 0)
    def _():
        acc_ref[...] = jnp.zeros_like(acc_ref)

    acc_ref[...] += jnp.dot(y_ref[...], w_ref[...], preferred_element_type=jnp.float32)

    @pl.when(kk == pl.num_programs(3) - 1)
    def _():
        o_ref[...] = (acc_ref[...] + b_ref[...]).astype(o_ref.dtype)


def output_projection(y, w_p, b_p, *, tm_target=256, tn_target=256, tk_target=512):
    """y: (B, T, C); w_p: (C, C) = Wp^T; b_p: (1, C)  ->  (B, T, C) in f32."""
    B, T, C = y.shape
    sub_mult = _sublane_mult(y.dtype)
    tm = _pick_tile(T, tm_target, sub_mult)
    tn = _pick_tile(C, tn_target, 128)
    tk = _pick_tile(C, tk_target, 128)
    return pl.pallas_call(
        _out_proj_kernel,
        out_shape=jax.ShapeDtypeStruct((B, T, C), jnp.float32),
        grid_spec=pltpu.PrefetchScalarGridSpec(
            num_scalar_prefetch=0,
            grid=(B, T // tm, C // tn, C // tk),
            in_specs=[
                pl.BlockSpec((pl.Squeezed(), tm, tk), lambda b, i, j, kk: (b, i, kk)),
                pl.BlockSpec((tk, tn), lambda b, i, j, kk: (kk, j)),
                pl.BlockSpec((1, tn), lambda b, i, j, kk: (0, j)),
            ],
            out_specs=pl.BlockSpec((pl.Squeezed(), tm, tn),
                                   lambda b, i, j, kk: (b, i, j)),
            scratch_shapes=[pltpu.VMEM((tm, tn), jnp.float32)],
        ),
        compiler_params=pltpu.CompilerParams(
            dimension_semantics=("parallel", "parallel", "parallel", "arbitrary"),
            vmem_limit_bytes=_vmem_limit_bytes(),
        ),
    )(y, w_p, b_p)


# ----------------------------------------------------------------------------
# One-time host-side parameter rearrangement (PyTorch nn.Linear layout in).
#   - QKV weights grouped per packed-head group, 1/sqrt(D) folded into q (in f32).
#   - Output projection stays a plain (C, C) = Wp^T matrix.
# ----------------------------------------------------------------------------
def prepare_params(params, *, n_head, heads_per_group, compute_dtype=jnp.float32):
    C = params["wq"].shape[0]
    D = C // n_head
    hk = heads_per_group
    G = n_head // hk
    N = hk * D
    scale = 1.0 / math.sqrt(D)

    def group_w(w):   # (C_out, C_in) -> (G, C_in, hk*D): W^T, head-major within each group
        return jnp.transpose(w.T.reshape(C, G, N), (1, 0, 2))

    def group_b(b):   # (C,) -> (G, 1, hk*D)
        return b.reshape(G, 1, N)

    w_qkv = jnp.concatenate(
        [group_w(params["wq"]) * scale, group_w(params["wk"]), group_w(params["wv"])],
        axis=0).astype(compute_dtype)                                     # (3G, C, N)
    b_qkv = jnp.concatenate(
        [group_b(params["bq"]) * scale, group_b(params["bk"]), group_b(params["bv"])],
        axis=0).astype(jnp.float32)                                       # (3G, 1, N)
    w_p = params["wp"].T.astype(compute_dtype)                            # (C, C)
    b_p = params["bp"].reshape(1, C).astype(jnp.float32)                  # (1, C)
    return {"w_qkv": w_qkv, "b_qkv": b_qkv, "w_p": w_p, "b_p": b_p}


# ----------------------------------------------------------------------------
# Full module forward
# ----------------------------------------------------------------------------
def full_attention_forward(params, x, mask=None, *, n_head, causal=True,
                           compute_dtype=jnp.bfloat16):
    B, T, C = x.shape
    assert C % n_head == 0
    D = C // n_head
    hk = _pick_heads_per_group(n_head, D)
    # TODO(synk): attn_drop / resid_drop are omitted (inference-mode identity).
    prepped = prepare_params(params, n_head=n_head, heads_per_group=hk,
                             compute_dtype=compute_dtype)

    mask_f = (jnp.ones((B, T), dtype=jnp.float32) if mask is None
              else mask.astype(jnp.float32))

    qkv = qkv_projection(x.astype(compute_dtype), prepped["w_qkv"], prepped["b_qkv"])
    y, att_mean = attention(qkv, mask_f, n_head=n_head, heads_per_group=hk,
                            causal=causal)
    out = output_projection(y, prepped["w_p"], prepped["b_p"])
    return out, att_mean


# ----------------------------------------------------------------------------
# Pure-JAX reference (mirrors the PyTorch forward exactly, dropout = identity)
# ----------------------------------------------------------------------------
def reference_forward(params, x, mask=None, *, n_head, causal=True):
    B, T, C = x.shape
    D = C // n_head
    k = x @ params["wk"].T + params["bk"]
    q = x @ params["wq"].T + params["bq"]
    v = x @ params["wv"].T + params["bv"]
    k = k.reshape(B, T, n_head, D).transpose(0, 2, 1, 3)
    q = q.reshape(B, T, n_head, D).transpose(0, 2, 1, 3)
    v = v.reshape(B, T, n_head, D).transpose(0, 2, 1, 3)
    att = (q @ jnp.swapaxes(k, -2, -1)) * (1.0 / math.sqrt(D))
    if causal:
        tril = jnp.tril(jnp.ones((T, T)))[None, None]
        att = jnp.where(tril == 0, -jnp.inf, att)
    if mask is not None:
        att = jnp.where(~mask[:, None, None, :], -jnp.inf, att)
    att = jax.nn.softmax(att, axis=-1)
    y = att @ v
    y = y.transpose(0, 2, 1, 3).reshape(B, T, C)
    att = att.mean(axis=1)
    y = y @ params["wp"].T + params["bp"]
    return y, att


if __name__ == "__main__":
    B, T, C, H = 2, 8, 32, 4  # batch, seq, n_embd, n_head

    key = jax.random.PRNGKey(0)
    keys = jax.random.split(key, 10)
    init = lambda k, shape: (0.02 * jax.random.normal(k, shape)).astype(jnp.float32)

    params = {
        "wk": init(keys[0], (C, C)), "bk": init(keys[1], (C,)),
        "wq": init(keys[2], (C, C)), "bq": init(keys[3], (C,)),
        "wv": init(keys[4], (C, C)), "bv": init(keys[5], (C,)),
        "wp": init(keys[6], (C, C)), "bp": init(keys[7], (C,)),
    }

    x = jax.random.normal(keys[8], (B, T, C), dtype=jnp.float32)
    # padding mask: batch 0 fully valid, batch 1 last two positions masked out
    pos = jnp.arange(T)
    mask = jnp.stack([jnp.ones((T,), dtype=bool), pos < (T - 2)], axis=0)

    y_ref, att_ref = reference_forward(params, x, mask, n_head=H, causal=True)

    # f32 path: strict check against the reference.
    y, att = full_attention_forward(params, x, mask, n_head=H, causal=True,
                                    compute_dtype=jnp.float32)
    y = jax.block_until_ready(y)
    att = jax.block_until_ready(att)
    assert y.shape == (B, T, C) and att.shape == (B, T, T)
    assert np.allclose(np.asarray(y), np.asarray(y_ref), rtol=1e-5, atol=1e-5)
    assert np.allclose(np.asarray(att), np.asarray(att_ref), rtol=1e-5, atol=1e-5)

    # bf16 MXU-input path (default; softmax / accumulation stay f32): looser tolerance.
    y16, att16 = full_attention_forward(params, x, mask, n_head=H, causal=True)
    y16 = jax.block_until_ready(y16)
    att16 = jax.block_until_ready(att16)
    assert np.allclose(np.asarray(y16), np.asarray(y_ref), rtol=5e-2, atol=5e-2)
    assert np.allclose(np.asarray(att16), np.asarray(att_ref), rtol=5e-2, atol=5e-2)

    print("KERNEL_OK")
</pallas_src>

<mosaic_0001>
module attributes {stable_mosaic.version = 11 : i64} {
  func.func @_qkv_proj_kernel(%arg0: i32, %arg1: i32, %arg2: i32, %arg3: memref<1x8x32xf32, #tpu.memory_space<vmem>>, %arg4: memref<1x32x32xf32, #tpu.memory_space<vmem>>, %arg5: memref<1x1x32xf32, #tpu.memory_space<vmem>>, %arg6: memref<1x1x8x32xf32, #tpu.memory_space<vmem>>) attributes {dimension_semantics = [#tpu.dimension_semantics<parallel>, #tpu.dimension_semantics<parallel>, #tpu.dimension_semantics<arbitrary>], iteration_bounds = array<i64: 2, 1, 3>, scalar_prefetch = 0 : i64, scratch_operands = 0 : i64, tpu.core_type = #tpu.core_type<tc>, window_params = [{transform_indices = @transform_0, window_bounds = array<i64: 1, 8, 32>}, {transform_indices = @transform_1, window_bounds = array<i64: 1, 32, 32>}, {transform_indices = @transform_2, window_bounds = array<i64: 1, 1, 32>}, {transform_indices = @transform_3, window_bounds = array<i64: 1, 1, 8, 32>}]} {
    %c0 = arith.constant 0 : index
    %c0_0 = arith.constant 0 : index
    %c0_1 = arith.constant 0 : index
    %0 = vector.load %arg3[%c0, %c0_0, %c0_1] : memref<1x8x32xf32, #tpu.memory_space<vmem>>, vector<1x8x32xf32>
    %1 = vector.shape_cast %0 : vector<1x8x32xf32> to vector<8x32xf32>
    %c0_2 = arith.constant 0 : index
    %c0_3 = arith.constant 0 : index
    %c0_4 = arith.constant 0 : index
    %2 = vector.load %arg4[%c0_2, %c0_3, %c0_4] : memref<1x32x32xf32, #tpu.memory_space<vmem>>, vector<1x32x32xf32>
    %3 = vector.shape_cast %2 : vector<1x32x32xf32> to vector<32x32xf32>
    %cst = arith.constant dense<0.000000e+00> : vector<8x32xf32>
    %4 = tpu.matmul %1, %3, %cst {dimension_numbers = #tpu.dot_dimension_numbers<[1], [0], [0], [1], [0, 0, 1, 1], [], []>} : vector<8x32xf32>, vector<32x32xf32>, vector<8x32xf32> -> vector<8x32xf32>
    %c0_5 = arith.constant 0 : index
    %c0_6 = arith.constant 0 : index
    %c0_7 = arith.constant 0 : index
    %5 = vector.load %arg5[%c0_5, %c0_6, %c0_7] : memref<1x1x32xf32, #tpu.memory_space<vmem>>, vector<1x1x32xf32>
    %6 = vector.shape_cast %5 : vector<1x1x32xf32> to vector<1x32xf32>
    %7 = vector.broadcast %6 : vector<1x32xf32> to vector<8x32xf32>
    %8 = arith.addf %4, %7 : vector<8x32xf32>
    %c0_8 = arith.constant 0 : index
    %c0_9 = arith.constant 0 : index
    %c0_10 = arith.constant 0 : index
    %c0_11 = arith.constant 0 : index
    %9 = vector.load %arg6[%c0_8, %c0_9, %c0_10, %c0_11] : memref<1x1x8x32xf32, #tpu.memory_space<vmem>>, vector<1x1x8x32xf32>
    %10 = vector.shape_cast %9 : vector<1x1x8x32xf32> to vector<8x32xf32>
    %11 = vector.shape_cast %8 : vector<8x32xf32> to vector<1x1x8x32xf32>
    tpu.vector_store %arg6[%c0_8, %c0_9, %c0_10, %c0_11], %11 {strides = array<i32>} : memref<1x1x8x32xf32, #tpu.memory_space<vmem>>, vector<1x1x8x32xf32>,
    return
  }
  func.func @transform_0(%arg0: i32, %arg1: i32, %arg2: i32) -> (i32, i32, i32) {
    %c0_i32 = arith.constant 0 : i32
    %c0_i32_0 = arith.constant 0 : i32
    return %arg0, %arg1, %c0_i32 : i32, i32, i32
  }
  func.func @transform_1(%arg0: i32, %arg1: i32, %arg2: i32) -> (i32, i32, i32) {
    %c0_i32 = arith.constant 0 : i32
    %c0_i32_0 = arith.constant 0 : i32
    %c0_i32_1 = arith.constant 0 : i32
    return %arg2, %c0_i32, %c0_i32_0 : i32, i32, i32
  }
  func.func @transform_2(%arg0: i32, %arg1: i32, %arg2: i32) -> (i32, i32, i32) {
    %c0_i32 = arith.constant 0 : i32
    %c0_i32_0 = arith.constant 0 : i32
    %c0_i32_1 = arith.constant 0 : i32
    return %arg2, %c0_i32, %c0_i32_0 : i32, i32, i32
  }
  func.func @transform_3(%arg0: i32, %arg1: i32, %arg2: i32) -> (i32, i32, i32, i32) {
    %c0_i32 = arith.constant 0 : i32
    %c0_i32_0 = arith.constant 0 : i32
    return %arg2, %arg0, %arg1, %c0_i32 : i32, i32, i32, i32
  }
}

</mosaic_0001>

<llo_original>
// kernel: tpu_custom_call.1
$region0: #{tpu_custom_call.1}
  #allocation0 [shape = 'u32[]', space=smem, size = 0x4, offset = 0x4, fixed_abs, tag = 'smem constant byte address 0x4 - core index']
  #allocation1 [shape = 'u32[144,128]{1,0:T(1,128)}', space=vmem, size = 0x12000, scoped, tag = 'internal scratch']
  %s0 = inlined_call_operand.hbm [shape: f32[2,8,32], index: 0, kind: input, shape index: {}]
  %s1 = inlined_call_operand.hbm [shape: f32[3,32,32], index: 1, kind: input, shape index: {}]
  %s2 = inlined_call_operand.hbm [shape: f32[3,1,32], index: 2, kind: input, shape index: {}]
  %s3 = inlined_call_operand.hbm [shape: f32[3,2,8,32], index: 3, kind: output, shape index: {}]
  %s4 = sld [smem:[#allocation0]]
  $region57: #{tpu_custom_call.1} parent=0
    _
  %s6 = ssub.s32 1, %s4
  %s7 = scalar_select 0, %s6, %s4
  $region1: #{tpu_custom_call.1} parent=0
    #allocation2 [shape = 'u8[8192]{0}', space=vmem, size = 0x2000, scoped, tag = 'input window, operand 0']
    #allocation3 [shape = 's32[2]{0}', space=sflag, size = 0x8, scoped, tag = 'scoped memory for tpu_custom_call.1']
    #allocation4 [shape = 's32[2]{0}', space=sflag, size = 0x8, scoped, tag = 'scoped memory for tpu_custom_call.1']
    #allocation5 [shape = 'u8[32768]{0}', space=vmem, size = 0x8000, scoped, tag = 'input window, operand 1']
    #allocation6 [shape = 's32[2]{0}', space=sflag, size = 0x8, scoped, tag = 'scoped memory for tpu_custom_call.1']
    #allocation7 [shape = 'u8[1024]{0}', space=vmem, size = 0x400, scoped, tag = 'input window, operand 2']
    #allocation8 [shape = 'u8[8192]{0}', space=vmem, size = 0x2000, scoped, tag = 'output window, operand 0']
    %8 = vsyncpa [#allocation3], 0
    %s9 = scalar_lea.sflag [#allocation3], 1
    %10 = vsyncpa %s9, 0
    %11 = vsyncpa [#allocation6], 0
    %s12 = scalar_lea.sflag [#allocation6], 1
    %13 = vsyncpa %s12, 0
    %14 = vsyncpa [#allocation4], 0
    %s15 = scalar_lea.sflag [#allocation4], 1
    %16 = vsyncpa %s15, 0
    loop: start=0, step=1, limit=8
    $region2: #{tpu_custom_call.1} parent=1 // loop_pre_header
      _
    $region3: #{tpu_custom_call.1} parent=1 // loop_header
      %s18 = sphi 0, %s22
      %p19 = scmp.ge.s32.totalorder %s18, 8
      %s25 = sphi 0, %s44
      %s26 = sphi 0, %s40
      %s27 = sphi 0, %s36
      %s28 = sphi 0, %s25
      %s29 = sphi 0, %s26
      %s30 = sphi 0, %s27
      %s31 = sphi 0, %s28
      %s32 = sphi 0, %s29
      %s33 = sphi 0, %s30
      %s49 = sphi 0, %s51
      %s52 = sphi 0, %s49
      %s53 = sphi 0, %s52
      %s69 = sphi 0, %s53
      %s75 = sphi 0, %s77
      %s78 = sphi 0, %s75
      %s79 = sphi 0, %s78
      %s95 = sphi 0, %s79
      %s101 = sphi 0, %s103
      %s104 = sphi 0, %s101
      %s105 = sphi 0, %s104
      %s121 = sphi 0, %s105
      %s131 = sphi 0, %s133
      %s134 = sphi 0, %s131
      %s135 = sphi 0, %s134
      %s151 = sphi 0, %s135
    $region4: #{tpu_custom_call.1} parent=1 // loop_header_branch
      %21 = sbr.rel (%p19) target = $region8
    $region5: #{tpu_custom_call.1} parent=1 // loop_body
      %s23 = ssub.s32 %s18, 1
      %s24 = ssub.s32 %s18, 2
      %s34 = sadd.s32 1, %s27
      %p35 = scmp.ge.s32.totalorder %s34, 3
      %s36 = scalar_select %p35, 0, %s34
      %s37 = sadd.s32 1, %s26
      %s38 = scalar_select %p35, %s37, %s26
      %p39 = scmp.ge.s32.totalorder %s38, 1
      %s40 = scalar_select %p39, 0, %s38
      %s41 = sadd.s32 1, %s25
      %s42 = scalar_select %p39, %s41, %s25
      %p43 = scmp.ge.s32.totalorder %s42, 2
      %s44 = scalar_select %p43, 0, %s42
      %s45 = ssub.s32 %s25, %s44
      %s46 = ssub.s32 %s26, %s40
      %s47 = sor.u32 %s45, %s46
      %p48 = scmp.eq.s32.totalorder %s47, 0
      %s50 = sadd.s32 %s49, 1
      %s51 = scalar_select %p48, %s49, %s50
      %p54 = pneg %p48
      %p55 = scmp.eq.s32.totalorder %s18, 5
      %p56 = por %p54, %p55
      %p57 = scmp.ne.s32.totalorder %s49, %s52
      %p58 = scmp.eq.s32.totalorder %s18, 0
      %p59 = por %p57, %p58
      %p60 = scmp.ne.s32.totalorder %s49, %s52
      %p61 = scmp.eq.s32.totalorder %s23, 5
      %p62 = por %p60, %p61
      %p63 = scmp.ne.s32.totalorder %s52, %s53
      %p64 = scmp.eq.s32.totalorder %s23, 0
      %p65 = por %p63, %p64
      %p66 = scmp.ne.s32.totalorder %s52, %s53
      %p67 = scmp.eq.s32.totalorder %s24, 5
      %p68 = por %p66, %p67
      %p70 = scmp.ne.s32.totalorder %s53, %s69
      %p71 = scmp.eq.s32.totalorder %s24, 0
      %p72 = por %p70, %p71
      %s73 = ssub.s32 %s27, %s36
      %p74 = scmp.eq.s32.totalorder %s73, 0
      %s76 = sadd.s32 %s75, 1
      %s77 = scalar_select %p74, %s75, %s76
      %p80 = pneg %p74
      %p81 = scmp.eq.s32.totalorder %s18, 5
      %p82 = por %p80, %p81
      %p83 = scmp.ne.s32.totalorder %s75, %s78
      %p84 = scmp.eq.s32.totalorder %s18, 0
      %p85 = por %p83, %p84
      %p86 = scmp.ne.s32.totalorder %s75, %s78
      %p87 = scmp.eq.s32.totalorder %s23, 5
      %p88 = por %p86, %p87
      %p89 = scmp.ne.s32.totalorder %s78, %s79
      %p90 = scmp.eq.s32.totalorder %s23, 0
      %p91 = por %p89, %p90
      %p92 = scmp.ne.s32.totalorder %s78, %s79
      %p93 = scmp.eq.s32.totalorder %s24, 5
      %p94 = por %p92, %p93
      %p96 = scmp.ne.s32.totalorder %s79, %s95
      %p97 = scmp.eq.s32.totalorder %s24, 0
      %p98 = por %p96, %p97
      %s99 = ssub.s32 %s27, %s36
      %p100 = scmp.eq.s32.totalorder %s99, 0
      %s102 = sadd.s32 %s101, 1
      %s103 = scalar_select %p100, %s101, %s102
      %p106 = pneg %p100
      %p107 = scmp.eq.s32.totalorder %s18, 5
      %p108 = por %p106, %p107
      %p109 = scmp.ne.s32.totalorder %s101, %s104
      %p110 = scmp.eq.s32.totalorder %s18, 0
      %p111 = por %p109, %p110
      %p112 = scmp.ne.s32.totalorder %s101, %s104
      %p113 = scmp.eq.s32.totalorder %s23, 5
      %p114 = por %p112, %p113
      %p115 = scmp.ne.s32.totalorder %s104, %s105
      %p116 = scmp.eq.s32.totalorder %s23, 0
      %p117 = por %p115, %p116
      %p118 = scmp.ne.s32.totalorder %s104, %s105
      %p119 = scmp.eq.s32.totalorder %s24, 5
      %p120 = por %p118, %p119
      %p122 = scmp.ne.s32.totalorder %s105, %s121
      %p123 = scmp.eq.s32.totalorder %s24, 0
      %p124 = por %p122, %p123
      %s125 = ssub.s32 %s27, %s36
      %s126 = ssub.s32 %s25, %s44
      %s127 = sor.u32 %s125, %s126
      %s128 = ssub.s32 %s26, %s40
      %s129 = sor.u32 %s127, %s128
      %p130 = scmp.eq.s32.totalorder %s129, 0
      %s132 = sadd.s32 %s131, 1
      %s133 = scalar_select %p130, %s131, %s132
      %p136 = pneg %p130
      %p137 = scmp.eq.s32.totalorder %s18, 5
      %p138 = por %p136, %p137
      %p139 = scmp.ne.s32.totalorder %s131, %s134
      %p140 = scmp.eq.s32.totalorder %s18, 0
      %p141 = por %p139, %p140
      %p142 = scmp.ne.s32.totalorder %s131, %s134
      %p143 = scmp.eq.s32.totalorder %s23, 5
      %p144 = por %p142, %p143
      %p145 = scmp.ne.s32.totalorder %s134, %s135
      %p146 = scmp.eq.s32.totalorder %s23, 0
      %p147 = por %p145, %p146
      %p148 = scmp.ne.s32.totalorder %s134, %s135
      %p149 = scmp.eq.s32.totalorder %s24, 5
      %p150 = por %p148, %p149
      %p152 = scmp.ne.s32.totalorder %s135, %s151
      %p153 = scmp.eq.s32.totalorder %s24, 0
      %p154 = por %p152, %p153
      %p155 = scmp.le.s32.totalorder 1, %s18
      %p156 = scmp.lt.s32.totalorder %s18, 7
      %p157 = pnand %p155, %p156
      %p158 = pneg %p157
      // Predicated region
      $region9: #{tpu_custom_call.1} parent=5 // pred_check
        _
      $region10: #{tpu_custom_call.1} parent=5 // pred_check_branch
        %160 = sbr.rel (%p157) target = $region12
      $region11: #{tpu_custom_call.1} parent=5 // pred_region
        %s161 = ssub.s32 %s18, 1
      $region12: #{tpu_custom_call.1} parent=5 // pred_fallthru
        _
      %p162 = scmp.lt.s32.totalorder %s18, 6
      // Predicated region
      $region13: #{tpu_custom_call.1} parent=5 // pred_check
        %p163 = pneg %p162
      $region14: #{tpu_custom_call.1} parent=5 // pred_check_branch
        %165 = sbr.rel (%p163) target = $region16
      $region15: #{tpu_custom_call.1} parent=5 // pred_region
        // Predicated region
        $region17: #{tpu_custom_call.1} parent=15 // pred_check
          %p166 = pneg %p59
        $region18: #{tpu_custom_call.1} parent=15 // pred_check_branch
          %168 = sbr.rel (%p166) target = $region20
        $region19: #{tpu_custom_call.1} parent=15 // pred_region
          %s169 = sand.u32 %s49, 1
          %s170 = scalar_lea.sflag [#allocation3], %s169
          %s171 = sand.u32 %s49, 1
          %s172 = smul.addr %s171, 8
          %s173 = scalar_lea.vmem [#allocation2], %s172
          %s175 = ssub.s32 128, 128
          %176 = vsyncadd %s170, %s175
          %s177 = sadd.s32 %s26, %s25
          %s178 = smul.addr %s177, 128
          %s179 = scalar_lea.hbm %s0, %s178
          %s181 = sshll.u32 %s173, 4
          %s182 = int_to_ptr.vmem [resolvable:$true] %s181
          %184 = dma.hbm_to_vmem [thread:$0]  %s179, 128, %s182, %s170
        $region20: #{tpu_custom_call.1} parent=15 // pred_fallthru
          _
        // Predicated region
        $region21: #{tpu_custom_call.1} parent=15 // pred_check
          %p185 = pneg %p85
        $region22: #{tpu_custom_call.1} parent=15 // pred_check_branch
          %187 = sbr.rel (%p185) target = $region24
        $region23: #{tpu_custom_call.1} parent=15 // pred_region
          %s188 = sand.u32 %s18, 1
          %s189 = scalar_lea.sflag [#allocation6], %s188
          %s190 = sand.u32 %s75, 1
          %s191 = smul.addr %s190, 32
          %s192 = scalar_lea.vmem [#allocation5], %s191
          %s194 = ssub.s32 512, 512
          %195 = vsyncadd %s189, %s194
          %s196 = smul.addr %s27, 4
          %s197 = smul.addr %s196, 128
          %s198 = scalar_lea.hbm %s1, %s197
          %s199 = sshll.u32 %s192, 4
          %s200 = int_to_ptr.vmem [resolvable:$true] %s199
          %205 = dma.hbm_to_vmem [thread:$0]  %s198, 512, %s200, %s189, 128, 128, 8
        $region24: #{tpu_custom_call.1} parent=15 // pred_fallthru
          _
        // Predicated region
        $region25: #{tpu_custom_call.1} parent=15 // pred_check
          %p206 = pneg %p111
        $region26: #{tpu_custom_call.1} parent=15 // pred_check_branch
          %208 = sbr.rel (%p206) target = $region28
        $region27: #{tpu_custom_call.1} parent=15 // pred_region
          %s209 = sand.u32 %s18, 1
          %s210 = scalar_lea.sflag [#allocation6], %s209
          %s211 = sand.u32 %s101, 1
          %s212 = scalar_lea.vmem [#allocation7], %s211
          %s214 = ssub.s32 16, 16
          %215 = vsyncadd %s210, %s214
          %s216 = smul.addr %s27, 16
          %s217 = scalar_lea.hbm %s2, %s216
          %s219 = sshll.u32 %s212, 4
          %s220 = int_to_ptr.vmem [resolvable:$true] %s219
          %222 = dma.hbm_to_vmem [thread:$0]  %s217, 16, %s220, %s210
        $region28: #{tpu_custom_call.1} parent=15 // pred_fallthru
          _
      $region16: #{tpu_custom_call.1} parent=5 // pred_fallthru
        _
      %p223 = scmp.le.s32.totalorder 1, %s18
      %p224 = scmp.lt.s32.totalorder %s18, 7
      %p225 = pnand %p223, %p224
      %p226 = pneg %p225
      // Predicated region
      $region29: #{tpu_custom_call.1} parent=5 // pred_check
        _
      $region30: #{tpu_custom_call.1} parent=5 // pred_check_branch
        %228 = sbr.rel (%p225) target = $region32
      $region31: #{tpu_custom_call.1} parent=5 // pred_region
        %s229 = ssub.s32 %s18, 1
        %s230 = sand.u32 %s52, 1
        %s231 = scalar_lea.sflag [#allocation3], %s230
        %s232 = sand.u32 %s52, 1
        %s233 = smul.addr %s232, 8
        %s234 = scalar_lea.vmem [#allocation2], %s233
        // Predicated region
        $region33: #{tpu_custom_call.1} parent=31 // pred_check
          %p235 = pneg %p65
        $region34: #{tpu_custom_call.1} parent=31 // pred_check_branch
          %237 = sbr.rel (%p235) target = $region36
        $region35: #{tpu_custom_call.1} parent=31 // pred_region
          %238 = dma.done %s231, 128
        $region36: #{tpu_custom_call.1} parent=31 // pred_fallthru
          _
        %s239 = sand.u32 %s23, 1
        %s240 = scalar_lea.sflag [#allocation6], %s239
        %s241 = sand.u32 %s78, 1
        %s242 = smul.addr %s241, 32
        %s243 = scalar_lea.vmem [#allocation5], %s242
        // Predicated region
        $region37: #{tpu_custom_call.1} parent=31 // pred_check
          %p244 = pneg %p91
        $region38: #{tpu_custom_call.1} parent=31 // pred_check_branch
          %246 = sbr.rel (%p244) target = $region40
        $region39: #{tpu_custom_call.1} parent=31 // pred_region
          %247 = dma.done %s240, 512
        $region40: #{tpu_custom_call.1} parent=31 // pred_fallthru
          _
        %s248 = sand.u32 %s23, 1
        %s249 = scalar_lea.sflag [#allocation6], %s248
        %s250 = sand.u32 %s104, 1
        %s251 = scalar_lea.vmem [#allocation7], %s250
        // Predicated region
        $region41: #{tpu_custom_call.1} parent=31 // pred_check
          %p252 = pneg %p117
        $region42: #{tpu_custom_call.1} parent=31 // pred_check_branch
          %254 = sbr.rel (%p252) target = $region44
        $region43: #{tpu_custom_call.1} parent=31 // pred_region
          %255 = dma.done %s249, 16
        $region44: #{tpu_custom_call.1} parent=31 // pred_fallthru
          _
        %s256 = sand.u32 %s52, 1
        %s257 = scalar_lea.sflag [#allocation3], %s256
        %s258 = sand.u32 %s52, 1
        %s259 = smul.addr %s258, 8
        %s260 = scalar_lea.vmem [#allocation2], %s259
        %p261 = pneg %p65
        %p262 = pneg %p62
        %s263 = sand.u32 %s23, 1
        %s264 = scalar_lea.sflag [#allocation6], %s263
        %s265 = sand.u32 %s78, 1
        %s266 = smul.addr %s265, 32
        %s267 = scalar_lea.vmem [#allocation5], %s266
        %p268 = pneg %p91
        %p269 = pneg %p88
        %s270 = sand.u32 %s23, 1
        %s271 = scalar_lea.sflag [#allocation6], %s270
        %s272 = sand.u32 %s104, 1
        %s273 = scalar_lea.vmem [#allocation7], %s272
        %p274 = pneg %p117
        %p275 = pneg %p114
        %p276 = pneg %p147
        %p277 = pneg %p144
        %s278 = sand.u32 %s134, 1
        %s279 = scalar_lea.sflag [#allocation4], %s278
        %s280 = sand.u32 %s134, 1
        %s281 = smul.addr %s280, 8
        %s282 = scalar_lea.vmem [#allocation8], %s281
        %v283 = vld [vmem:[%s234] sm:$0xff]
        %v284 = vld [vmem:[%s243] sm:$0xff]
        %v285 = vld [vmem:[%s243 + $0x8] sm:$0xff]
        %v286 = vld [vmem:[%s243 + $0x10] sm:$0xff]
        %v287 = vld [vmem:[%s243 + $0x18] sm:$0xff]
        %v288 = vld [vmem:[%s251] sm:$0x1]
        %v290 = vlaneseq
        %v291 = vshrl.u32 %v290, 7
        %v292 = vsub.s32 0, %v291
        %v293 = vrot.slane %v288, %v292
        %vm295 = vcmask 261120
        %v297 = vsel %vm295, %v283, 0
        %299 = vmatprep.subr.mxu0 0.0
        %300 = vmatpush1.msra.mxu0 %v284
        %301 = vmatprep.subr.mxu0 0.0
        %302 = vmatpush1.msra.mxu0 %v285
        %303 = vmatprep.subr.mxu0 0.0
        %304 = vmatpush1.msra.mxu0 %v286
        %305 = vmatprep.subr.mxu0 0.0
        %306 = vmatpush1.msra.mxu0 %v287
        %307 = vmatprep.subr.mxu0 0.0
        %308 = vmatpush1.msra.mxu0 0.0
        %309 = vmatprep.subr.mxu0 0.0
        %310 = vmatpush1.msra.mxu0 0.0
        %311 = vmatprep.subr.mxu0 0.0
        %312 = vmatpush1.msra.mxu0 0.0
        %313 = vmatprep.subr.mxu0 0.0
        %314 = vmatpush1.msra.mxu0 0.0
        %315 = vmatprep.subr.mxu0 0.0
        %316 = vmatpush1.msra.mxu0 0.0
        %317 = vmatprep.subr.mxu0 0.0
        %318 = vmatpush1.msra.mxu0 0.0
        %319 = vmatprep.subr.mxu0 0.0
        %320 = vmatpush1.msra.mxu0 0.0
        %321 = vmatprep.subr.mxu0 0.0
        %322 = vmatpush1.msra.mxu0 0.0
        %323 = vmatprep.subr.mxu0 0.0
        %324 = vmatpush1.msra.mxu0 0.0
        %325 = vmatprep.subr.mxu0 0.0
        %326 = vmatpush1.msra.mxu0 0.0
        %327 = vmatprep.subr.mxu0 0.0
        %328 = vmatpush1.msra.mxu0 0.0
        %329 = vmatprep.subr.mxu0 0.0
        %330 = vmatpush1.msra.mxu0 0.0
        %331 = vmatprep.subr.mxu0 0.0
        %332 = vmatpush1.msra.mxu0 0.0
        %333 = vmatprep.subr.mxu0 0.0
        %334 = vmatpush1.msra.mxu0 0.0
        %335 = vmatprep.subr.mxu0 0.0
        %336 = vmatpush1.msra.mxu0 0.0
        %337 = vmatprep.subr.mxu0 0.0
        %338 = vmatpush1.msra.mxu0 0.0
        %339 = vmatprep.subr.mxu0 0.0
        %340 = vmatpush1.msra.mxu0 0.0
        %341 = vmatprep.subr.mxu0 0.0
        %342 = vmatpush1.msra.mxu0 0.0
        %343 = vmatprep.subr.mxu0 0.0
        %344 = vmatpush1.msra.mxu0 0.0
        %345 = vmatprep.subr.mxu0 0.0
        %346 = vmatpush1.msra.mxu0 0.0
        %347 = vmatprep.subr.mxu0 0.0
        %348 = vmatpush1.msra.mxu0 0.0
        %349 = vmatprep.subr.mxu0 0.0
        %350 = vmatpush1.msra.mxu0 0.0
        %351 = vmatprep.subr.mxu0 0.0
        %352 = vmatpush1.msra.mxu0 0.0
        %353 = vmatprep.subr.mxu0 0.0
        %354 = vmatpush1.msra.mxu0 0.0
        %355 = vmatprep.subr.mxu0 0.0
        %356 = vmatpush1.msra.mxu0 0.0
        %357 = vmatprep.subr.mxu0 0.0
        %358 = vmatpush1.msra.mxu0 0.0
        %359 = vmatprep.subr.mxu0 0.0
        %360 = vmatpush1.msra.mxu0 0.0
        %361 = vmatprep.subr.mxu0 0.0
        %362 = vmatpush1.msra.mxu0 0.0
        %363 = vmatprep.mubr.f32.mxu0 0.0
        %364 = vmatmul.mubr.f32.gmra.mrb[0].mxu0 %v297
        %v365 = vpop.f32.mrb[0].mxu0
        %v366 = vadd.f32 %v293, %v365
        %v367 = vpop.f32.mrb[0].mxu0
        %368 = vdwg.mxu0
        %369 = vst.msk [vmem:[%s282] sm:$0xff] %vm295, %v366
        %s370 = sand.u32 %s134, 1
        %s371 = scalar_lea.sflag [#allocation4], %s370
        %s372 = sand.u32 %s134, 1
        %s373 = smul.addr %s372, 8
        %s374 = scalar_lea.vmem [#allocation8], %s373
        // Predicated region
        $region45: #{tpu_custom_call.1} parent=31 // pred_check
          %p375 = pneg %p144
        $region46: #{tpu_custom_call.1} parent=31 // pred_check_branch
          %377 = sbr.rel (%p375) target = $region48
        $region47: #{tpu_custom_call.1} parent=31 // pred_region
          %s379 = ssub.s32 128, 128
          %380 = vsyncadd %s371, %s379
          %s381 = sadd.s32 %s29, %s28
          %s382 = smul.addr %s30, 2
          %s383 = sadd.s32 %s381, %s382
          %s384 = smul.addr %s383, 128
          %s385 = scalar_lea.hbm %s3, %s384
          %s387 = sshll.u32 %s374, 4
          %s388 = int_to_ptr.vmem [resolvable:$true] %s387
          %390 = dma.vmem_to_hbm [thread:$0]  %s388, 128, %s385, %s371
        $region48: #{tpu_custom_call.1} parent=31 // pred_fallthru
          _
      $region32: #{tpu_custom_call.1} parent=5 // pred_fallthru
        _
      %p391 = scmp.le.s32.totalorder 2, %s18
      // Predicated region
      $region49: #{tpu_custom_call.1} parent=5 // pred_check
        %p392 = pneg %p391
      $region50: #{tpu_custom_call.1} parent=5 // pred_check_branch
        %394 = sbr.rel (%p392) target = $region52
      $region51: #{tpu_custom_call.1} parent=5 // pred_region
        %s395 = ssub.s32 %s18, 2
        // Predicated region
        $region53: #{tpu_custom_call.1} parent=51 // pred_check
          %p396 = pneg %p150
        $region54: #{tpu_custom_call.1} parent=51 // pred_check_branch
          %398 = sbr.rel (%p396) target = $region56
        $region55: #{tpu_custom_call.1} parent=51 // pred_region
          %s399 = sand.u32 %s135, 1
          %s400 = scalar_lea.sflag [#allocation4], %s399
          %s401 = sand.u32 %s135, 1
          %s402 = smul.addr %s401, 8
          %s403 = scalar_lea.vmem [#allocation8], %s402
          %404 = dma.done %s400, 128
        $region56: #{tpu_custom_call.1} parent=51 // pred_fallthru
          _
      $region52: #{tpu_custom_call.1} parent=5 // pred_fallthru
        _
    $region6: #{tpu_custom_call.1} parent=1 // loop_footer
      %s22 = sadd.s32 1, %s18
    $region7: #{tpu_custom_call.1} parent=1 // loop_footer_branch
      %17 = sbr.rel target = $region3
    $region8: #{tpu_custom_call.1} parent=1 // loop_exit
      _
    %405 = vsyncpa [#allocation3], 1
    %s406 = scalar_lea.sflag [#allocation3], 1
    %407 = vsyncpa %s406, 1
    %408 = vsyncpa [#allocation6], 1
    %s409 = scalar_lea.sflag [#allocation6], 1
    %410 = vsyncpa %s409, 1
    %411 = vsyncpa [#allocation4], 1
    %s412 = scalar_lea.sflag [#allocation4], 1
    %413 = vsyncpa %s412, 1

</llo_original>
